<compile_context>
chip_gen: v7x
topology: tpu7x:2x2x1
jax: 0.10.0
libtpu: 0.0.40
codegen_flags: <defaults>
</compile_context>

<pallas_src>
import jax
import jax.numpy as jnp
from jax.experimental import pallas as pl
from jax.experimental.pallas import tpu as pltpu

_LANE = 128
_MIN_STEPS = 8                      # keep the DMA pipeline / both v7x TCs fed
_STEP_IO_FLOOR = 2 * 1024 * 1024    # never shrink a step below ~2 MiB of in+out


def _abs_softmax_kernel(x_ref, o_ref):
    # Block shape (Nb, C, hw_t); softmax of |x| over the channel axis (axis=1).
    a = jnp.abs(x_ref[...])                       # I/O dtype (packed bf16 VALU ok)
    m = jnp.max(a, axis=1, keepdims=True)         # exact in any dtype (selection)
    e = jnp.exp(a.astype(jnp.float32) - m.astype(jnp.float32))
    s = jnp.sum(e, axis=1, keepdims=True)
    # Exact reciprocal: the kernel is HBM-bound, so the longer divide sequence
    # is free filler and keeps row sums accurate to ~1e-7.
    o_ref[...] = (e * pl.reciprocal(s, approx=False)).astype(o_ref.dtype)


def _vmem_capacity_bytes() -> int:
    try:
        cap = getattr(pltpu.get_tpu_info(), "vmem_capacity_bytes", None)
        if cap:
            return int(cap)
    except Exception:
        pass
    return 64 * 1024 * 1024  # conservative (v7x-sized) fallback


def _vmem_limit_and_budget():
    cap = _vmem_capacity_bytes()
    # ~48 MiB limit on v7x (64 MiB physical), ~96 MiB on v5e/v6e (128 MiB).
    limit = max(min((cap * 3) // 4, cap - (8 << 20)), 32 << 20)
    return limit, limit // 2


def _bytes_per_lane_col(C: int, itemsize: int) -> int:
    # VMEM cost of one lane column of a block: double-buffered input + output
    # in the caller dtype (sublane padding for small C: f32 rounds C up to 8,
    # bf16 to 16) plus ~8 B/elem of f32 intermediates (`e` + headroom).
    sub = 8 * max(4 // max(itemsize, 1), 1)
    c_io = pl.cdiv(C, sub) * sub
    c_f32 = pl.cdiv(C, 8) * 8
    return 4 * itemsize * c_io + 8 * c_f32


def _choose_hw_tile(C: int, HW: int, itemsize: int, budget_bytes: int) -> int:
    max_cols = max(budget_bytes // _bytes_per_lane_col(C, itemsize), _LANE)
    if max_cols >= HW:
        return HW  # whole image in one lane tile (full-dim block is always legal)
    # Tile the lane axis: multiple of 128, never wider than the array, so edge
    # blocks are the standard ragged-masked case.
    return max((min(max_cols, HW) // _LANE) * _LANE, _LANE)


def _choose_batch_tile(N: int, C: int, hw_t: int, itemsize: int,
                       budget_bytes: int) -> int:
    per_image = _bytes_per_lane_col(C, itemsize) * hw_t
    nb = int(max(min(budget_bytes // max(per_image, 1), N), 1))

    def io_bytes(nb_: int) -> int:       # in + out HBM traffic per grid step
        return 2 * itemsize * nb_ * C * hw_t

    # Prefer >= _MIN_STEPS grid steps, but never below the per-step I/O floor.
    while nb > 1 and pl.cdiv(N, nb) < _MIN_STEPS and io_bytes(nb // 2) >= _STEP_IO_FLOOR:
        nb //= 2
    while N % nb:                         # keep leading-dim blocks exact
        nb -= 1
    return nb


def abs_softmax(x: jax.Array, *, hw_tile=None, batch_tile=None) -> jax.Array:
    """Softmax over dim=1 of |x| for a 4-D NCHW tensor (PyTorch-equivalent)."""
    assert x.ndim == 4, "expected NCHW input"
    N, C, H, W = x.shape
    HW = H * W
    x3 = x.reshape(N, C, HW)
    itemsize = jnp.dtype(x.dtype).itemsize

    vmem_limit, budget = _vmem_limit_and_budget()
    hw_t = int(hw_tile) if hw_tile is not None else _choose_hw_tile(C, HW, itemsize, budget)
    hw_steps = pl.cdiv(HW, hw_t)
    if batch_tile is not None:
        nb = int(batch_tile)
    elif hw_steps == 1:
        nb = _choose_batch_tile(N, C, hw_t, itemsize, budget)
    else:
        nb = 1

    # TODO(synk): for very large C (thousands) add a C grid axis with an online
    # softmax (running max/sum in VMEM scratch) instead of shrinking the lane
    # tile to 128. For C below the sublane packing factor (8 f32 / 16 bf16)
    # blocks are sublane-padded; acceptable while HBM-bound.

    out = pl.pallas_call(
        _abs_softmax_kernel,
        out_shape=jax.ShapeDtypeStruct((N, C, HW), x.dtype),
        grid_spec=pltpu.PrefetchScalarGridSpec(
            num_scalar_prefetch=0,
            grid=(pl.cdiv(N, nb), hw_steps),
            in_specs=[pl.BlockSpec((nb, C, hw_t), lambda n, h: (n, 0, h))],
            out_specs=pl.BlockSpec((nb, C, hw_t), lambda n, h: (n, 0, h)),
        ),
        compiler_params=pltpu.CompilerParams(
            dimension_semantics=("parallel", "parallel"),
            vmem_limit_bytes=vmem_limit,
        ),
    )(x3)

    return out.reshape(N, C, H, W)


if __name__ == "__main__":
    key = jax.random.PRNGKey(0)
    x = jax.random.normal(key, (2, 4, 16, 16), dtype=jnp.float32)

    y = abs_softmax(x)
    jax.block_until_ready(y)

    # Sanity check against plain-JAX reference (PyTorch implicit dim=1).
    ref = jax.nn.softmax(jnp.abs(x), axis=1)
    assert y.shape == x.shape and y.dtype == x.dtype
    assert jnp.allclose(y, ref, atol=1e-5, rtol=1e-5)
    assert jnp.allclose(jnp.sum(y, axis=1), 1.0, atol=1e-5)

    # Ragged lane-tile path: HW=384 is not a multiple of the forced 256-lane
    # tile, so the last block is masked by Pallas (no host pad/slice passes).
    x2 = jax.random.normal(jax.random.PRNGKey(1), (3, 6, 16, 24), dtype=jnp.float32)
    y2 = abs_softmax(x2, hw_tile=256, batch_tile=1)
    jax.block_until_ready(y2)
    ref2 = jax.nn.softmax(jnp.abs(x2), axis=1)
    assert jnp.allclose(y2, ref2, atol=1e-5, rtol=1e-5)
    assert jnp.allclose(jnp.sum(y2, axis=1), 1.0, atol=1e-5)

    print("KERNEL_OK")
</pallas_src>

<mosaic_0001>
module attributes {stable_mosaic.version = 11 : i64} {
  func.func @_abs_softmax_kernel(%arg0: i32, %arg1: i32, %arg2: memref<2x4x256xf32, #tpu.memory_space<vmem>>, %arg3: memref<2x4x256xf32, #tpu.memory_space<vmem>>) attributes {dimension_semantics = [#tpu.dimension_semantics<parallel>, #tpu.dimension_semantics<parallel>], iteration_bounds = array<i64: 1, 1>, scalar_prefetch = 0 : i64, scratch_operands = 0 : i64, tpu.core_type = #tpu.core_type<tc>, window_params = [{transform_indices = @transform_0, window_bounds = array<i64: 2, 4, 256>}, {transform_indices = @transform_1, window_bounds = array<i64: 2, 4, 256>}]} {
    %c0 = arith.constant 0 : index
    %c0_0 = arith.constant 0 : index
    %c0_1 = arith.constant 0 : index
    %0 = vector.load %arg2[%c0, %c0_0, %c0_1] : memref<2x4x256xf32, #tpu.memory_space<vmem>>, vector<2x4x256xf32>
    %1 = math.absf %0 : vector<2x4x256xf32>
    %cst = arith.constant dense<0xFF800000> : vector<2x256xf32>
    %2 = vector.multi_reduction <maximumf>, %1, %cst [1] : vector<2x4x256xf32> to vector<2x256xf32>
    %3 = vector.shape_cast %2 : vector<2x256xf32> to vector<2x1x256xf32>
    %4 = vector.broadcast %3 : vector<2x1x256xf32> to vector<2x4x256xf32>
    %5 = arith.subf %1, %4 : vector<2x4x256xf32>
    %6 = math.exp %5 : vector<2x4x256xf32>
    %cst_2 = arith.constant dense<0.000000e+00> : vector<2x256xf32>
    %7 = vector.multi_reduction <add>, %6, %cst_2 [1] : vector<2x4x256xf32> to vector<2x256xf32>
    %8 = vector.shape_cast %7 : vector<2x256xf32> to vector<2x1x256xf32>
    %9 = tpu.reciprocal %8 : vector<2x1x256xf32> -> vector<2x1x256xf32>
    %10 = vector.broadcast %9 : vector<2x1x256xf32> to vector<2x4x256xf32>
    %11 = arith.mulf %6, %10 : vector<2x4x256xf32>
    %c0_3 = arith.constant 0 : index
    %c0_4 = arith.constant 0 : index
    %c0_5 = arith.constant 0 : index
    %12 = vector.load %arg3[%c0_3, %c0_4, %c0_5] : memref<2x4x256xf32, #tpu.memory_space<vmem>>, vector<2x4x256xf32>
    tpu.vector_store %arg3[%c0_3, %c0_4, %c0_5], %11 {strides = array<i32>} : memref<2x4x256xf32, #tpu.memory_space<vmem>>, vector<2x4x256xf32>,
    return
  }
  func.func @transform_0(%arg0: i32, %arg1: i32) -> (i32, i32, i32) {
    %c0_i32 = arith.constant 0 : i32
    %c0_i32_0 = arith.constant 0 : i32
    return %arg0, %c0_i32, %arg1 : i32, i32, i32
  }
  func.func @transform_1(%arg0: i32, %arg1: i32) -> (i32, i32, i32) {
    %c0_i32 = arith.constant 0 : i32
    %c0_i32_0 = arith.constant 0 : i32
    return %arg0, %c0_i32, %arg1 : i32, i32, i32
  }
}

</mosaic_0001>

<llo_original>
// kernel: tpu_custom_call.1
$region0: #{tpu_custom_call.1}
  #allocation0 [shape = 'u32[]', space=smem, size = 0x4, offset = 0x4, fixed_abs, tag = 'smem constant byte address 0x4 - core index']
  #allocation1 [shape = 'u32[144,128]{1,0:T(1,128)}', space=vmem, size = 0x12000, scoped, tag = 'internal scratch']
  %s0 = inlined_call_operand.hbm [shape: f32[2,4,256], index: 0, kind: input, shape index: {}]
  %s1 = inlined_call_operand.hbm [shape: f32[2,4,256], index: 1, kind: output, shape index: {}]
  %s2 = sld [smem:[#allocation0]]
  $region18: #{tpu_custom_call.1} parent=0
    _
  %s4 = ssub.s32 1, %s2
  %s5 = scalar_select 0, %s4, %s2
  $region1: #{tpu_custom_call.1} parent=0
    #allocation2 [shape = 'u8[8192]{0}', space=vmem, size = 0x2000, scoped, tag = 'input window, operand 0, single buffered']
    #allocation3 [shape = 's32[1]{0}', space=sflag, size = 0x4, scoped, tag = 'scoped memory for tpu_custom_call.1']
    #allocation4 [shape = 's32[1]{0}', space=sflag, size = 0x4, scoped, tag = 'scoped memory for tpu_custom_call.1']
    #allocation5 [shape = 'u8[8192]{0}', space=vmem, size = 0x2000, scoped, tag = 'output window, operand 0, single buffered']
    %6 = vsyncpa [#allocation3], 0
    %7 = vsyncpa [#allocation4], 0
    // Predicated region
    $region2: #{tpu_custom_call.1} parent=1 // pred_check
      _
    $region3: #{tpu_custom_call.1} parent=1 // pred_check_branch
      %9 = sbr.rel (0) target = $region5
    $region4: #{tpu_custom_call.1} parent=1 // pred_region
      %s11 = ssub.s32 256, 256
      %12 = vsyncadd [#allocation3], %s11
      %s13 = sshll.u32 [#allocation2], 4
      %s14 = int_to_ptr.vmem [resolvable:$true] %s13
      %19 = dma.hbm_to_vmem [thread:$0]  %s0, 256, %s14, [#allocation3], 128, 128, 8
    $region5: #{tpu_custom_call.1} parent=1 // pred_fallthru
      _
    // Predicated region
    $region6: #{tpu_custom_call.1} parent=1 // pred_check
      _
    $region7: #{tpu_custom_call.1} parent=1 // pred_check_branch
      %21 = sbr.rel (0) target = $region9
    $region8: #{tpu_custom_call.1} parent=1 // pred_region
      %22 = dma.done [#allocation3], 256
    $region9: #{tpu_custom_call.1} parent=1 // pred_fallthru
      _
    %v23 = vld [vmem:[#allocation2] sm:$0xff]
    %v24 = vld [vmem:[#allocation2 + $0x8] sm:$0xff]
    %v25 = vand.u32 2147483647, %v23
    %v26 = vand.u32 2147483647, %v24
    %v29 = vcombine.high %v25, %v25
    %v30 = vcombine.high %v26, %v26
    %vm33 = vcmask 1043456
    %v34 = vsel %vm33, %v25, -inf
    %v35 = vrot.slane %v34, 4
    %v36 = vmax.f32 %v34, %v35
    %v37 = vrot.slane %v36, 2
    %v38 = vmax.f32 %v36, %v37
    %v39 = vrot.slane %v38, 1
    %v40 = vmax.f32 %v38, %v39
    %v41 = vsel %vm33, %v29, -inf
    %v42 = vrot.slane %v41, 4
    %v43 = vmax.f32 %v41, %v42
    %v44 = vrot.slane %v43, 2
    %v45 = vmax.f32 %v43, %v44
    %v46 = vrot.slane %v45, 1
    %v47 = vmax.f32 %v45, %v46
    %v48 = vsel %vm33, %v26, -inf
    %v49 = vrot.slane %v48, 4
    %v50 = vmax.f32 %v48, %v49
    %v51 = vrot.slane %v50, 2
    %v52 = vmax.f32 %v50, %v51
    %v53 = vrot.slane %v52, 1
    %v54 = vmax.f32 %v52, %v53
    %v55 = vsel %vm33, %v30, -inf
    %v56 = vrot.slane %v55, 4
    %v57 = vmax.f32 %v55, %v56
    %v58 = vrot.slane %v57, 2
    %v59 = vmax.f32 %v57, %v58
    %v60 = vrot.slane %v59, 1
    %v61 = vmax.f32 %v59, %v60
    %v66 = vcombine.low %v40, %v47
    %v67 = vcombine.low %v54, %v61
    %v70 = vsub.f32 %v25, %v66
    %v71 = vsub.f32 %v26, %v67
    %v72 = vmul.f32 %v70, 1.442695
    %v73 = vpow.pop %v72
    %v74 = vmul.f32 %v71, 1.442695
    %v75 = vpow.pop %v74
    %v78 = vcombine.high %v73, %v73
    %v79 = vcombine.high %v75, %v75
    %v82 = vsel %vm33, %v73, 0.0
    %v83 = vrot.slane %v82, 4
    %v84 = vadd.f32 %v82, %v83
    %v85 = vrot.slane %v84, 2
    %v86 = vadd.f32 %v84, %v85
    %v87 = vrot.slane %v86, 1
    %v88 = vadd.f32 %v86, %v87
    %v89 = vsel %vm33, %v78, 0.0
    %v90 = vrot.slane %v89, 4
    %v91 = vadd.f32 %v89, %v90
    %v92 = vrot.slane %v91, 2
    %v93 = vadd.f32 %v91, %v92
    %v94 = vrot.slane %v93, 1
    %v95 = vadd.f32 %v93, %v94
    %v96 = vsel %vm33, %v75, 0.0
    %v97 = vrot.slane %v96, 4
    %v98 = vadd.f32 %v96, %v97
    %v99 = vrot.slane %v98, 2
    %v100 = vadd.f32 %v98, %v99
    %v101 = vrot.slane %v100, 1
    %v102 = vadd.f32 %v100, %v101
    %v103 = vsel %vm33, %v79, 0.0
    %v104 = vrot.slane %v103, 4
    %v105 = vadd.f32 %v103, %v104
    %v106 = vrot.slane %v105, 2
    %v107 = vadd.f32 %v105, %v106
    %v108 = vrot.slane %v107, 1
    %v109 = vadd.f32 %v107, %v108
    %v110 = vrcp.pop %v88
    %v111 = vrcp.pop %v95
    %v112 = vrcp.pop %v102
    %v113 = vrcp.pop %v109
    %v118 = vcombine.low %v110, %v111
    %v119 = vcombine.low %v112, %v113
    %v122 = vmul.f32 %v73, %v118
    %v123 = vmul.f32 %v75, %v119
    %124 = vst [vmem:[#allocation5] sm:$0xff] %v122
    %125 = vst [vmem:[#allocation5 + $0x8] sm:$0xff] %v123
    // Predicated region
    $region10: #{tpu_custom_call.1} parent=1 // pred_check
      _
    $region11: #{tpu_custom_call.1} parent=1 // pred_check_branch
      %127 = sbr.rel (0) target = $region13
    $region12: #{tpu_custom_call.1} parent=1 // pred_region
      %s129 = ssub.s32 256, 256
      %130 = vsyncadd [#allocation4], %s129
      %s131 = sshll.u32 [#allocation5], 4
      %s132 = int_to_ptr.vmem [resolvable:$true] %s131
      %137 = dma.vmem_to_hbm [thread:$0]  %s132, 256, %s1, [#allocation4], 128, 128, 8
    $region13: #{tpu_custom_call.1} parent=1 // pred_fallthru
      _
    // Predicated region
    $region14: #{tpu_custom_call.1} parent=1 // pred_check
      _
    $region15: #{tpu_custom_call.1} parent=1 // pred_check_branch
      %139 = sbr.rel (0) target = $region17
    $region16: #{tpu_custom_call.1} parent=1 // pred_region
      %140 = dma.done [#allocation4], 256
    $region17: #{tpu_custom_call.1} parent=1 // pred_fallthru
      _
    %141 = vsyncpa [#allocation3], 1
    %142 = vsyncpa [#allocation4], 1

</llo_original>
